<compile_context>
chip_gen: v6e
topology: v6e:2x2x1
jax: 0.10.0
libtpu: 0.0.40
codegen_flags: <defaults>
</compile_context>

<pallas_src>
import jax
import jax.numpy as jnp
from jax import lax
from jax.experimental import pallas as pl
from jax.experimental.pallas import tpu as pltpu

INPUT_DIM = 6
HIDDEN_DIMS = [64, 32, 16]


def _mlp_kernel(x_ref,
                w1_ref, b1_ref,
                w2_ref, b2_ref,
                w3_ref, b3_ref,
                w4t_ref, b4_ref,
                o_ref):
    # x tile: (tb, 6) f32, row-major exactly as it lives in HBM.
    x = x_ref[...]

    # Layer 1: Linear(6, 64) + ReLU.
    # "NT" matmul: (64, 6) x (tb, 6)^T -> (64, tb); batch tile on the MXU N-dim.
    h = lax.dot_general(
        w1_ref[...], x,
        dimension_numbers=(((1,), (1,)), ((), ())),
        preferred_element_type=jnp.float32) + b1_ref[...]
    h = jnp.maximum(h, 0.0)

    # Layer 2: Linear(64, 32) + ReLU.  (32, 64) @ (64, tb) -> (32, tb)
    h = jnp.dot(w2_ref[...], h, preferred_element_type=jnp.float32) + b2_ref[...]
    h = jnp.maximum(h, 0.0)

    # Layer 3: Linear(32, 16) + ReLU.  (16, 32) @ (32, tb) -> (16, tb)
    h = jnp.dot(w3_ref[...], h, preferred_element_type=jnp.float32) + b3_ref[...]
    h = jnp.maximum(h, 0.0)

    # Head: Linear(16, 1) kept off the MXU — VPU broadcast-mul + sublane reduce.
    z = jnp.sum(h * w4t_ref[...], axis=0, keepdims=True) + b4_ref[...]   # (1, tb)

    # Sigmoid on the EUP; lane-dense (1, 1, tb) store.
    o_ref[...] = jax.nn.sigmoid(z)[None]


def causal_connection_predictor(x, params, *, tb=1024):
    """x: (N, 6) float32.  Returns sigmoid(MLP(x)) with trailing dim squeezed -> (N,)."""
    n, d = x.shape
    assert d == INPUT_DIM

    # Keep tb a multiple of 128 (lane-dense output, sublane-aligned x tile) and
    # avoid gross over-padding for small batches.  The grid axis is "parallel",
    # so on v7x (2 TensorCores) choose N / tb >= 2 for large batches.
    tb = max(128, min(tb, pl.cdiv(n, 128) * 128))
    n_pad = pl.cdiv(n, tb) * tb
    if n_pad != n:
        x = jnp.pad(x, ((0, n_pad - n), (0, 0)))
    n_tiles = n_pad // tb

    (w1, b1), (w2, b2), (w3, b3), (w4, b4) = params
    w4t = w4.T  # (16, 1): head weight as a column for the in-kernel VPU reduce.

    def full_spec(shape):
        # Whole (tiny) weight/bias array every grid step; stays VMEM-resident.
        return pl.BlockSpec(shape, lambda i: (0, 0))

    out = pl.pallas_call(
        _mlp_kernel,
        out_shape=jax.ShapeDtypeStruct((n_tiles, 1, tb), jnp.float32),
        grid_spec=pltpu.PrefetchScalarGridSpec(
            num_scalar_prefetch=0,
            grid=(n_tiles,),
            in_specs=[
                pl.BlockSpec((tb, INPUT_DIM), lambda i: (i, 0)),   # x tile
                full_spec(w1.shape), full_spec(b1.shape),
                full_spec(w2.shape), full_spec(b2.shape),
                full_spec(w3.shape), full_spec(b3.shape),
                full_spec(w4t.shape), full_spec(b4.shape),
            ],
            out_specs=pl.BlockSpec((1, 1, tb), lambda i: (i, 0, 0)),
        ),
        compiler_params=pltpu.CompilerParams(
            dimension_semantics=("parallel",)),
    )(x, w1, b1, w2, b2, w3, b3, w4t, b4)

    # Lane-dense (n_tiles, 1, tb) -> (N,); drops the sigmoid of the pad rows.
    # (.squeeze() of the PyTorch module: (N, 1) -> (N,).)
    return out.reshape(n_pad)[:n]


def init_params(key):
    """Deterministic synthetic parameters with PyTorch nn.Linear-like init.

    Weights stored (out_features, in_features); biases (out_features, 1) so
    they broadcast over the lane (batch) axis inside the kernel.
    """
    dims = [INPUT_DIM] + HIDDEN_DIMS + [1]
    params = []
    for fan_in, fan_out in zip(dims[:-1], dims[1:]):
        key, kw, kb = jax.random.split(key, 3)
        bound = 1.0 / jnp.sqrt(fan_in)
        w = jax.random.uniform(kw, (fan_out, fan_in), jnp.float32, -bound, bound)
        b = jax.random.uniform(kb, (fan_out, 1), jnp.float32, -bound, bound)
        params.append((w, b))
    return params


def _reference(x, params):
    h = x
    for i, (w, b) in enumerate(params):
        h = h @ w.T + b.T
        if i < len(params) - 1:
            h = jnp.maximum(h, 0.0)
    return jnp.squeeze(jax.nn.sigmoid(h), axis=-1)


if __name__ == "__main__":
    key = jax.random.PRNGKey(0)
    key, kx = jax.random.split(key)

    N = 300                                   # small batch of spacetime point-pairs
    x = jax.random.normal(kx, (N, INPUT_DIM), dtype=jnp.float32)

    params = init_params(key)

    # TODO(synk): Dropout(0.2) is only active in training; kernel implements
    # eval-mode (identity) dropout.
    out = causal_connection_predictor(x, params)
    out = jax.block_until_ready(out)

    ref = _reference(x, params)
    assert out.shape == (N,)
    assert jnp.allclose(out, ref, atol=1e-5, rtol=1e-5), "mismatch vs reference"

    print("KERNEL_OK")
</pallas_src>

<mosaic_0001>
module attributes {stable_mosaic.version = 11 : i64} {
  func.func @_mlp_kernel(%arg0: i32, %arg1: memref<384x6xf32, #tpu.memory_space<vmem>>, %arg2: memref<64x6xf32, #tpu.memory_space<vmem>>, %arg3: memref<64x1xf32, #tpu.memory_space<vmem>>, %arg4: memref<32x64xf32, #tpu.memory_space<vmem>>, %arg5: memref<32x1xf32, #tpu.memory_space<vmem>>, %arg6: memref<16x32xf32, #tpu.memory_space<vmem>>, %arg7: memref<16x1xf32, #tpu.memory_space<vmem>>, %arg8: memref<16x1xf32, #tpu.memory_space<vmem>>, %arg9: memref<1x1xf32, #tpu.memory_space<vmem>>, %arg10: memref<1x1x384xf32, #tpu.memory_space<vmem>>) attributes {dimension_semantics = [#tpu.dimension_semantics<parallel>], iteration_bounds = array<i64: 1>, scalar_prefetch = 0 : i64, scratch_operands = 0 : i64, tpu.core_type = #tpu.core_type<tc>, window_params = [{transform_indices = @transform_0, window_bounds = array<i64: 384, 6>}, {pipeline_mode = #tpu.pipeline_mode<synchronous>, transform_indices = @transform_1, window_bounds = array<i64: 64, 6>}, {pipeline_mode = #tpu.pipeline_mode<synchronous>, transform_indices = @transform_2, window_bounds = array<i64: 64, 1>}, {pipeline_mode = #tpu.pipeline_mode<synchronous>, transform_indices = @transform_3, window_bounds = array<i64: 32, 64>}, {pipeline_mode = #tpu.pipeline_mode<synchronous>, transform_indices = @transform_4, window_bounds = array<i64: 32, 1>}, {pipeline_mode = #tpu.pipeline_mode<synchronous>, transform_indices = @transform_5, window_bounds = array<i64: 16, 32>}, {pipeline_mode = #tpu.pipeline_mode<synchronous>, transform_indices = @transform_6, window_bounds = array<i64: 16, 1>}, {pipeline_mode = #tpu.pipeline_mode<synchronous>, transform_indices = @transform_7, window_bounds = array<i64: 16, 1>}, {pipeline_mode = #tpu.pipeline_mode<synchronous>, transform_indices = @transform_8, window_bounds = array<i64: 1, 1>}, {transform_indices = @transform_9, window_bounds = array<i64: 1, 1, 384>}]} {
    %c0 = arith.constant 0 : index
    %c0_0 = arith.constant 0 : index
    %0 = vector.load %arg1[%c0, %c0_0] : memref<384x6xf32, #tpu.memory_space<vmem>>, vector<384x6xf32>
    %c0_1 = arith.constant 0 : index
    %c0_2 = arith.constant 0 : index
    %1 = vector.load %arg2[%c0_1, %c0_2] : memref<64x6xf32, #tpu.memory_space<vmem>>, vector<64x6xf32>
    %cst = arith.constant dense<0.000000e+00> : vector<64x384xf32>
    %2 = tpu.matmul %1, %0, %cst {dimension_numbers = #tpu.dot_dimension_numbers<[1], [1], [0], [0], [0, 0, 1, 0], [], []>} : vector<64x6xf32>, vector<384x6xf32>, vector<64x384xf32> -> vector<64x384xf32>
    %c0_3 = arith.constant 0 : index
    %c0_4 = arith.constant 0 : index
    %3 = vector.load %arg3[%c0_3, %c0_4] : memref<64x1xf32, #tpu.memory_space<vmem>>, vector<64x1xf32>
    %4 = vector.broadcast %3 : vector<64x1xf32> to vector<64x384xf32>
    %5 = arith.addf %2, %4 : vector<64x384xf32>
    %cst_5 = arith.constant 0.000000e+00 : f32
    %6 = vector.broadcast %cst_5 : f32 to vector<64x384xf32>
    %7 = arith.maximumf %5, %6 : vector<64x384xf32>
    %c0_6 = arith.constant 0 : index
    %c0_7 = arith.constant 0 : index
    %8 = vector.load %arg4[%c0_6, %c0_7] : memref<32x64xf32, #tpu.memory_space<vmem>>, vector<32x64xf32>
    %cst_8 = arith.constant dense<0.000000e+00> : vector<32x384xf32>
    %9 = tpu.matmul %8, %7, %cst_8 {dimension_numbers = #tpu.dot_dimension_numbers<[1], [0], [0], [1], [0, 0, 1, 1], [], []>} : vector<32x64xf32>, vector<64x384xf32>, vector<32x384xf32> -> vector<32x384xf32>
    %c0_9 = arith.constant 0 : index
    %c0_10 = arith.constant 0 : index
    %10 = vector.load %arg5[%c0_9, %c0_10] : memref<32x1xf32, #tpu.memory_space<vmem>>, vector<32x1xf32>
    %11 = vector.broadcast %10 : vector<32x1xf32> to vector<32x384xf32>
    %12 = arith.addf %9, %11 : vector<32x384xf32>
    %cst_11 = arith.constant 0.000000e+00 : f32
    %13 = vector.broadcast %cst_11 : f32 to vector<32x384xf32>
    %14 = arith.maximumf %12, %13 : vector<32x384xf32>
    %c0_12 = arith.constant 0 : index
    %c0_13 = arith.constant 0 : index
    %15 = vector.load %arg6[%c0_12, %c0_13] : memref<16x32xf32, #tpu.memory_space<vmem>>, vector<16x32xf32>
    %cst_14 = arith.constant dense<0.000000e+00> : vector<16x384xf32>
    %16 = tpu.matmul %15, %14, %cst_14 {dimension_numbers = #tpu.dot_dimension_numbers<[1], [0], [0], [1], [0, 0, 1, 1], [], []>} : vector<16x32xf32>, vector<32x384xf32>, vector<16x384xf32> -> vector<16x384xf32>
    %c0_15 = arith.constant 0 : index
    %c0_16 = arith.constant 0 : index
    %17 = vector.load %arg7[%c0_15, %c0_16] : memref<16x1xf32, #tpu.memory_space<vmem>>, vector<16x1xf32>
    %18 = vector.broadcast %17 : vector<16x1xf32> to vector<16x384xf32>
    %19 = arith.addf %16, %18 : vector<16x384xf32>
    %cst_17 = arith.constant 0.000000e+00 : f32
    %20 = vector.broadcast %cst_17 : f32 to vector<16x384xf32>
    %21 = arith.maximumf %19, %20 : vector<16x384xf32>
    %c0_18 = arith.constant 0 : index
    %c0_19 = arith.constant 0 : index
    %22 = vector.load %arg8[%c0_18, %c0_19] : memref<16x1xf32, #tpu.memory_space<vmem>>, vector<16x1xf32>
    %23 = vector.broadcast %22 : vector<16x1xf32> to vector<16x384xf32>
    %24 = arith.mulf %21, %23 : vector<16x384xf32>
    %cst_20 = arith.constant dense<0.000000e+00> : vector<384xf32>
    %25 = vector.multi_reduction <add>, %24, %cst_20 [0] : vector<16x384xf32> to vector<384xf32>
    %26 = vector.shape_cast %25 : vector<384xf32> to vector<1x384xf32>
    %c0_21 = arith.constant 0 : index
    %c0_22 = arith.constant 0 : index
    %27 = vector.load %arg9[%c0_21, %c0_22] : memref<1x1xf32, #tpu.memory_space<vmem>>, vector<1x1xf32>
    %28 = vector.broadcast %27 : vector<1x1xf32> to vector<1x384xf32>
    %29 = arith.addf %26, %28 : vector<1x384xf32>
    %30 = arith.negf %29 : vector<1x384xf32>
    %31 = math.exp %30 : vector<1x384xf32>
    %cst_23 = arith.constant 1.000000e+00 : f32
    %32 = vector.broadcast %cst_23 : f32 to vector<1x384xf32>
    %33 = arith.addf %32, %31 : vector<1x384xf32>
    %34 = arith.divf %32, %33 : vector<1x384xf32>
    %35 = vector.shape_cast %34 : vector<1x384xf32> to vector<1x1x384xf32>
    %c0_24 = arith.constant 0 : index
    %c0_25 = arith.constant 0 : index
    %c0_26 = arith.constant 0 : index
    %36 = vector.load %arg10[%c0_24, %c0_25, %c0_26] : memref<1x1x384xf32, #tpu.memory_space<vmem>>, vector<1x1x384xf32>
    tpu.vector_store %arg10[%c0_24, %c0_25, %c0_26], %35 {strides = array<i32>} : memref<1x1x384xf32, #tpu.memory_space<vmem>>, vector<1x1x384xf32>,
    return
  }
  func.func @transform_0(%arg0: i32) -> (i32, i32) {
    %c0_i32 = arith.constant 0 : i32
    %c0_i32_0 = arith.constant 0 : i32
    return %arg0, %c0_i32 : i32, i32
  }
  func.func @transform_1(%arg0: i32) -> (i32, i32) {
    %c0_i32 = arith.constant 0 : i32
    %c0_i32_0 = arith.constant 0 : i32
    %c0_i32_1 = arith.constant 0 : i32
    return %c0_i32, %c0_i32_0 : i32, i32
  }
  func.func @transform_2(%arg0: i32) -> (i32, i32) {
    %c0_i32 = arith.constant 0 : i32
    %c0_i32_0 = arith.constant 0 : i32
    %c0_i32_1 = arith.constant 0 : i32
    return %c0_i32, %c0_i32_0 : i32, i32
  }
  func.func @transform_3(%arg0: i32) -> (i32, i32) {
    %c0_i32 = arith.constant 0 : i32
    %c0_i32_0 = arith.constant 0 : i32
    %c0_i32_1 = arith.constant 0 : i32
    return %c0_i32, %c0_i32_0 : i32, i32
  }
  func.func @transform_4(%arg0: i32) -> (i32, i32) {
    %c0_i32 = arith.constant 0 : i32
    %c0_i32_0 = arith.constant 0 : i32
    %c0_i32_1 = arith.constant 0 : i32
    return %c0_i32, %c0_i32_0 : i32, i32
  }
  func.func @transform_5(%arg0: i32) -> (i32, i32) {
    %c0_i32 = arith.constant 0 : i32
    %c0_i32_0 = arith.constant 0 : i32
    %c0_i32_1 = arith.constant 0 : i32
    return %c0_i32, %c0_i32_0 : i32, i32
  }
  func.func @transform_6(%arg0: i32) -> (i32, i32) {
    %c0_i32 = arith.constant 0 : i32
    %c0_i32_0 = arith.constant 0 : i32
    %c0_i32_1 = arith.constant 0 : i32
    return %c0_i32, %c0_i32_0 : i32, i32
  }
  func.func @transform_7(%arg0: i32) -> (i32, i32) {
    %c0_i32 = arith.constant 0 : i32
    %c0_i32_0 = arith.constant 0 : i32
    %c0_i32_1 = arith.constant 0 : i32
    return %c0_i32, %c0_i32_0 : i32, i32
  }
  func.func @transform_8(%arg0: i32) -> (i32, i32) {
    %c0_i32 = arith.constant 0 : i32
    %c0_i32_0 = arith.constant 0 : i32
    %c0_i32_1 = arith.constant 0 : i32
    return %c0_i32, %c0_i32_0 : i32, i32
  }
  func.func @transform_9(%arg0: i32) -> (i32, i32, i32) {
    %c0_i32 = arith.constant 0 : i32
    %c0_i32_0 = arith.constant 0 : i32
    %c0_i32_1 = arith.constant 0 : i32
    return %arg0, %c0_i32, %c0_i32_0 : i32, i32, i32
  }
}

</mosaic_0001>

<llo_original>
// kernel: tpu_custom_call.1
$region0: #{tpu_custom_call.1}
  #allocation0 [shape = 'u32[]', space=smem, size = 0x4, offset = 0x4, fixed_abs, tag = 'smem constant byte address 0x4 - core index']
  #allocation1 [shape = 'u32[144,128]{1,0:T(1,128)}', space=vmem, size = 0x12000, scoped, tag = 'internal scratch']
  #allocation2 [shape = 'f32[1,1]{1,0:T(1,128)S(1)}', space=vmem, size = 0x200, scoped, tag = 'scoped memory for tpu_custom_call.1']
  %s0 = inlined_call_operand.vmem [shape: f32[384,6], index: 0, kind: input, shape index: {}]
  %s1 = inlined_call_operand.vmem [shape: f32[64,6], index: 1, kind: input, shape index: {}]
  %s2 = inlined_call_operand.vmem [shape: f32[64,1], index: 2, kind: input, shape index: {}]
  %s3 = inlined_call_operand.vmem [shape: f32[32,64], index: 3, kind: input, shape index: {}]
  %s4 = inlined_call_operand.vmem [shape: f32[32,1], index: 4, kind: input, shape index: {}]
  %s5 = inlined_call_operand.vmem [shape: f32[16,32], index: 5, kind: input, shape index: {}]
  %s6 = inlined_call_operand.vmem [shape: f32[16,1], index: 6, kind: input, shape index: {}]
  %s7 = inlined_call_operand.vmem [shape: f32[16,1], index: 7, kind: input, shape index: {}]
  %s8 = inlined_call_operand.<no memory space> [shape: f32[1,1], index: 8, kind: input, shape index: {}]
  %s9 = inlined_call_operand.hbm [shape: f32[1,1,384], index: 9, kind: output, shape index: {}]
  %s10 = sld [smem:[#allocation0]]
  $region46: #{tpu_custom_call.1} parent=0
    _
  %s12 = ssub.s32 1, %s10
  %s13 = scalar_select 0, %s12, %s10
  %v14 = vstv %s8
  %15 = vst [vmem:[#allocation2] sm:$0x1] %v14
  $region1: #{tpu_custom_call.1} parent=0
    #allocation3 [shape = 'u8[1536]{0}', space=vmem, size = 0x800, scoped, tag = 'output window, operand 0, single buffered']
    #allocation4 [shape = 's32[1]{0}', space=sflag, size = 0x4, scoped, tag = 'scoped memory for tpu_custom_call.1']
    %16 = vsyncpa [#allocation4], 0
    // Predicated region
    $region2: #{tpu_custom_call.1} parent=1 // pred_check
      _
    $region3: #{tpu_custom_call.1} parent=1 // pred_check_branch
      %18 = sbr.rel (0) target = $region5
    $region4: #{tpu_custom_call.1} parent=1 // pred_region
      _
    $region5: #{tpu_custom_call.1} parent=1 // pred_fallthru
      _
    // Predicated region
    $region6: #{tpu_custom_call.1} parent=1 // pred_check
      _
    $region7: #{tpu_custom_call.1} parent=1 // pred_check_branch
      %20 = sbr.rel (0) target = $region9
    $region8: #{tpu_custom_call.1} parent=1 // pred_region
      _
    $region9: #{tpu_custom_call.1} parent=1 // pred_fallthru
      _
    // Predicated region
    $region10: #{tpu_custom_call.1} parent=1 // pred_check
      _
    $region11: #{tpu_custom_call.1} parent=1 // pred_check_branch
      %22 = sbr.rel (0) target = $region13
    $region12: #{tpu_custom_call.1} parent=1 // pred_region
      _
    $region13: #{tpu_custom_call.1} parent=1 // pred_fallthru
      _
    // Predicated region
    $region14: #{tpu_custom_call.1} parent=1 // pred_check
      _
    $region15: #{tpu_custom_call.1} parent=1 // pred_check_branch
      %24 = sbr.rel (0) target = $region17
    $region16: #{tpu_custom_call.1} parent=1 // pred_region
      _
    $region17: #{tpu_custom_call.1} parent=1 // pred_fallthru
      _
    // Predicated region
    $region18: #{tpu_custom_call.1} parent=1 // pred_check
      _
    $region19: #{tpu_custom_call.1} parent=1 // pred_check_branch
      %26 = sbr.rel (0) target = $region21
    $region20: #{tpu_custom_call.1} parent=1 // pred_region
      _
    $region21: #{tpu_custom_call.1} parent=1 // pred_fallthru
      _
    // Predicated region
    $region22: #{tpu_custom_call.1} parent=1 // pred_check
      _
    $region23: #{tpu_custom_call.1} parent=1 // pred_check_branch
      %28 = sbr.rel (0) target = $region25
    $region24: #{tpu_custom_call.1} parent=1 // pred_region
      _
    $region25: #{tpu_custom_call.1} parent=1 // pred_fallthru
      _
    // Predicated region
    $region26: #{tpu_custom_call.1} parent=1 // pred_check
      _
    $region27: #{tpu_custom_call.1} parent=1 // pred_check_branch
      %30 = sbr.rel (0) target = $region29
    $region28: #{tpu_custom_call.1} parent=1 // pred_region
      _
    $region29: #{tpu_custom_call.1} parent=1 // pred_fallthru
      _
    // Predicated region
    $region30: #{tpu_custom_call.1} parent=1 // pred_check
      _
    $region31: #{tpu_custom_call.1} parent=1 // pred_check_branch
      %32 = sbr.rel (0) target = $region33
    $region32: #{tpu_custom_call.1} parent=1 // pred_region
      _
    $region33: #{tpu_custom_call.1} parent=1 // pred_fallthru
      _
    // Predicated region
    $region34: #{tpu_custom_call.1} parent=1 // pred_check
      _
    $region35: #{tpu_custom_call.1} parent=1 // pred_check_branch
      %34 = sbr.rel (0) target = $region37
    $region36: #{tpu_custom_call.1} parent=1 // pred_region
      _
    $region37: #{tpu_custom_call.1} parent=1 // pred_fallthru
      _
    %v35 = vld [vmem:[%s0] sm:$0xff]
    %v36 = vld [vmem:[%s0 + $0x8] sm:$0xff]
    %v37 = vld [vmem:[%s0 + $0x10] sm:$0xff]
    %v38 = vld [vmem:[%s0 + $0x18] sm:$0xff]
    %v39 = vld [vmem:[%s0 + $0x20] sm:$0xff]
    %v40 = vld [vmem:[%s0 + $0x28] sm:$0xff]
    %v41 = vld [vmem:[%s0 + $0x30] sm:$0xff]
    %v42 = vld [vmem:[%s0 + $0x38] sm:$0xff]
    %v43 = vld [vmem:[%s0 + $0x40] sm:$0xff]
    %v44 = vld [vmem:[%s0 + $0x48] sm:$0xff]
    %v45 = vld [vmem:[%s0 + $0x50] sm:$0xff]
    %v46 = vld [vmem:[%s0 + $0x58] sm:$0xff]
    %v47 = vld [vmem:[%s0 + $0x60] sm:$0xff]
    %v48 = vld [vmem:[%s0 + $0x68] sm:$0xff]
    %v49 = vld [vmem:[%s0 + $0x70] sm:$0xff]
    %v50 = vld [vmem:[%s0 + $0x78] sm:$0xff]
    %v51 = vld [vmem:[%s0 + $0x80] sm:$0xff]
    %v52 = vld [vmem:[%s0 + $0x88] sm:$0xff]
    %v53 = vld [vmem:[%s0 + $0x90] sm:$0xff]
    %v54 = vld [vmem:[%s0 + $0x98] sm:$0xff]
    %v55 = vld [vmem:[%s0 + $0xa0] sm:$0xff]
    %v56 = vld [vmem:[%s0 + $0xa8] sm:$0xff]
    %v57 = vld [vmem:[%s0 + $0xb0] sm:$0xff]
    %v58 = vld [vmem:[%s0 + $0xb8] sm:$0xff]
    %v59 = vld [vmem:[%s0 + $0xc0] sm:$0xff]
    %v60 = vld [vmem:[%s0 + $0xc8] sm:$0xff]
    %v61 = vld [vmem:[%s0 + $0xd0] sm:$0xff]
    %v62 = vld [vmem:[%s0 + $0xd8] sm:$0xff]
    %v63 = vld [vmem:[%s0 + $0xe0] sm:$0xff]
    %v64 = vld [vmem:[%s0 + $0xe8] sm:$0xff]
    %v65 = vld [vmem:[%s0 + $0xf0] sm:$0xff]
    %v66 = vld [vmem:[%s0 + $0xf8] sm:$0xff]
    %v67 = vld [vmem:[%s0 + $0x100] sm:$0xff]
    %v68 = vld [vmem:[%s0 + $0x108] sm:$0xff]
    %v69 = vld [vmem:[%s0 + $0x110] sm:$0xff]
    %v70 = vld [vmem:[%s0 + $0x118] sm:$0xff]
    %v71 = vld [vmem:[%s0 + $0x120] sm:$0xff]
    %v72 = vld [vmem:[%s0 + $0x128] sm:$0xff]
    %v73 = vld [vmem:[%s0 + $0x130] sm:$0xff]
    %v74 = vld [vmem:[%s0 + $0x138] sm:$0xff]
    %v75 = vld [vmem:[%s0 + $0x140] sm:$0xff]
    %v76 = vld [vmem:[%s0 + $0x148] sm:$0xff]
    %v77 = vld [vmem:[%s0 + $0x150] sm:$0xff]
    %v78 = vld [vmem:[%s0 + $0x158] sm:$0xff]
    %v79 = vld [vmem:[%s0 + $0x160] sm:$0xff]
    %v80 = vld [vmem:[%s0 + $0x168] sm:$0xff]
    %v81 = vld [vmem:[%s0 + $0x170] sm:$0xff]
    %v82 = vld [vmem:[%s0 + $0x178] sm:$0xff]
    %v83 = vld [vmem:[%s1] sm:$0xff]
    %v84 = vld [vmem:[%s1 + $0x8] sm:$0xff]
    %v85 = vld [vmem:[%s1 + $0x10] sm:$0xff]
    %v86 = vld [vmem:[%s1 + $0x18] sm:$0xff]
    %v87 = vld [vmem:[%s1 + $0x20] sm:$0xff]
    %v88 = vld [vmem:[%s1 + $0x28] sm:$0xff]
    %v89 = vld [vmem:[%s1 + $0x30] sm:$0xff]
    %v90 = vld [vmem:[%s1 + $0x38] sm:$0xff]
    %v91 = vld [vmem:[%s2] sm:$0xff]
    %v92 = vld [vmem:[%s2 + $0x8] sm:$0xff]
    %v93 = vld [vmem:[%s2 + $0x10] sm:$0xff]
    %v94 = vld [vmem:[%s2 + $0x18] sm:$0xff]
    %v95 = vld [vmem:[%s2 + $0x20] sm:$0xff]
    %v96 = vld [vmem:[%s2 + $0x28] sm:$0xff]
    %v97 = vld [vmem:[%s2 + $0x30] sm:$0xff]
    %v98 = vld [vmem:[%s2 + $0x38] sm:$0xff]
    %100 = vset.pattern.permute.xlu0 0
    %101 = vperm.xlu0 %100, %v91
    %v102 = vpop.permute.xlu0 %101
    %105 = vset.pattern.permute.xlu0 0
    %106 = vperm.xlu0 %105, %v92
    %v107 = vpop.permute.xlu0 %106
    %110 = vset.pattern.permute.xlu0 0
    %111 = vperm.xlu0 %110, %v93
    %v112 = vpop.permute.xlu0 %111
    %115 = vset.pattern.permute.xlu0 0
    %116 = vperm.xlu0 %115, %v94
    %v117 = vpop.permute.xlu0 %116
    %120 = vset.pattern.permute.xlu0 0
    %121 = vperm.xlu0 %120, %v95
    %v122 = vpop.permute.xlu0 %121
    %125 = vset.pattern.permute.xlu0 0
    %126 = vperm.xlu0 %125, %v96
    %v127 = vpop.permute.xlu0 %126
    %130 = vset.pattern.permute.xlu0 0
    %131 = vperm.xlu0 %130, %v97
    %v132 = vpop.permute.xlu0 %131
    %135 = vset.pattern.permute.xlu0 0
    %136 = vperm.xlu0 %135, %v98
    %v137 = vpop.permute.xlu0 %136
    %vm139 = vcmask 48128
    %v141 = vsel %vm139, %v83, 0
    %v144 = vsel %vm139, %v84, 0
    %v147 = vsel %vm139, %v85, 0
    %v150 = vsel %vm139, %v86, 0
    %v153 = vsel %vm139, %v87, 0
    %v156 = vsel %vm139, %v88, 0
    %v159 = vsel %vm139, %v89, 0
    %v162 = vsel %vm139, %v90, 0
    %v165 = vsel %vm139, %v35, 0
    %v168 = vsel %vm139, %v36, 0
    %v171 = vsel %vm139, %v37, 0
    %v174 = vsel %vm139, %v38, 0
    %v177 = vsel %vm139, %v39, 0
    %v180 = vsel %vm139, %v40, 0
    %v183 = vsel %vm139, %v41, 0
    %v186 = vsel %vm139, %v42, 0
    %v189 = vsel %vm139, %v43, 0
    %v192 = vsel %vm139, %v44, 0
    %v195 = vsel %vm139, %v45, 0
    %v198 = vsel %vm139, %v46, 0
    %v201 = vsel %vm139, %v47, 0
    %v204 = vsel %vm139, %v48, 0
    %v207 = vsel %vm139, %v49, 0
    %v210 = vsel %vm139, %v50, 0
    %v213 = vsel %vm139, %v51, 0
    %v216 = vsel %vm139, %v52, 0
    %v219 = vsel %vm139, %v53, 0
    %v222 = vsel %vm139, %v54, 0
    %v225 = vsel %vm139, %v55, 0
    %v228 = vsel %vm139, %v56, 0
    %v231 = vsel %vm139, %v57, 0
    %v234 = vsel %vm139, %v58, 0
    %v237 = vsel %vm139, %v59, 0
    %v240 = vsel %vm139, %v60, 0
    %v243 = vsel %vm139, %v61, 0
    %v246 = vsel %vm139, %v62, 0
    %v249 = vsel %vm139, %v63, 0
    %v252 = vsel %vm139, %v64, 0
    %v255 = vsel %vm139, %v65, 0
    %v258 = vsel %vm139, %v66, 0
    %v261 = vsel %vm139, %v67, 0
    %v264 = vsel %vm139, %v68, 0
    %v267 = vsel %vm139, %v69, 0
    %v270 = vsel %vm139, %v70, 0
    %v273 = vsel %vm139, %v71, 0
    %v276 = vsel %vm139, %v72, 0
    %v279 = vsel %vm139, %v73, 0
    %v282 = vsel %vm139, %v74, 0
    %v285 = vsel %vm139, %v75, 0
    %v288 = vsel %vm139, %v76, 0
    %v291 = vsel %vm139, %v77, 0
    %v294 = vsel %vm139, %v78, 0
    %v297 = vsel %vm139, %v79, 0
    %v300 = vsel %vm139, %v80, 0
    %v303 = vsel %vm139, %v81, 0
    %v306 = vsel %vm139, %v82, 0
    %308 = vmatprep.subr.mxu0 0.0
    %309 = vmatpush1.xpose.msra.mxu0 %v210
    %310 = vmatprep.subr.mxu0 0.0
    %311 = vmatpush1.xpose.msra.mxu0 %v207
    %312 = vmatprep.subr.mxu0 0.0
    %313 = vmatpush1.xpose.msra.mxu0 %v204
    %314 = vmatprep.subr.mxu0 0.0
    %315 = vmatpush1.xpose.msra.mxu0 %v201
    %316 = vmatprep.subr.mxu0 0.0
    %317 = vmatpush1.xpose.msra.mxu0 %v198
    %318 = vmatprep.subr.mxu0 0.0
    %319 = vmatpush1.xpose.msra.mxu0 %v195
    %320 = vmatprep.subr.mxu0 0.0
    %321 = vmatpush1.xpose.msra.mxu0 %v192
    %322 = vmatprep.subr.mxu0 0.0
    %323 = vmatpush1.xpose.msra.mxu0 %v189
    %324 = vmatprep.subr.mxu0 0.0
    %325 = vmatpush1.xpose.msra.mxu0 %v186
    %326 = vmatprep.subr.mxu0 0.0
    %327 = vmatpush1.xpose.msra.mxu0 %v183
    %328 = vmatprep.subr.mxu0 0.0
    %329 = vmatpush1.xpose.msra.mxu0 %v180
    %330 = vmatprep.subr.mxu0 0.0
    %331 = vmatpush1.xpose.msra.mxu0 %v177
    %332 = vmatprep.subr.mxu0 0.0
    %333 = vmatpush1.xpose.msra.mxu0 %v174
    %334 = vmatprep.subr.mxu0 0.0
    %335 = vmatpush1.xpose.msra.mxu0 %v171
    %336 = vmatprep.subr.mxu0 0.0
    %337 = vmatpush1.xpose.msra.mxu0 %v168
    %338 = vmatprep.subr.mxu0 0.0
    %339 = vmatpush1.xpose.msra.mxu0 %v165
    %340 = vmatprep.subr.mxu0 0.0
    %341 = vmatpush2.xpose.msra.mxu0 %v258
    %342 = vmatprep.subr.mxu0 0.0
    %343 = vmatpush2.xpose.msra.mxu0 %v255
    %344 = vmatprep.subr.mxu0 0.0
    %345 = vmatpush2.xpose.msra.mxu0 %v252
    %346 = vmatprep.subr.mxu0 0.0
    %347 = vmatpush2.xpose.msra.mxu0 %v249
    %348 = vmatprep.subr.mxu0 0.0
    %349 = vmatpush2.xpose.msra.mxu0 %v246
    %350 = vmatprep.subr.mxu0 0.0
    %351 = vmatpush2.xpose.msra.mxu0 %v243
    %352 = vmatprep.subr.mxu0 0.0
    %353 = vmatpush2.xpose.msra.mxu0 %v240
    %354 = vmatprep.subr.mxu0 0.0
    %355 = vmatpush2.xpose.msra.mxu0 %v237
    %356 = vmatprep.subr.mxu0 0.0
    %357 = vmatpush2.xpose.msra.mxu0 %v234
    %358 = vmatprep.subr.mxu0 0.0
    %359 = vmatpush2.xpose.msra.mxu0 %v231
    %360 = vmatprep.subr.mxu0 0.0
    %361 = vmatpush2.xpose.msra.mxu0 %v228
    %362 = vmatprep.subr.mxu0 0.0
    %363 = vmatpush2.xpose.msra.mxu0 %v225
    %364 = vmatprep.subr.mxu0 0.0
    %365 = vmatpush2.xpose.msra.mxu0 %v222
    %366 = vmatprep.subr.mxu0 0.0
    %367 = vmatpush2.xpose.msra.mxu0 %v219
    %368 = vmatprep.subr.mxu0 0.0
    %369 = vmatpush2.xpose.msra.mxu0 %v216
    %370 = vmatprep.subr.mxu0 0.0
    %371 = vmatpush2.xpose.msra.mxu0 %v213
    %372 = vmatprep.mubr.f32.mxu0 0.0
    %373 = vmatmul.mubr.f32.gmra.mxu0 %v141
    %v374 = vpop.f32.mrf.mxu0
    %v375 = vadd.f32 %v102, %v374
    %v376 = vpop.f32.mrf.mxu0
    %v377 = vadd.f32 %v102, %v376
    %378 = vmatprep.mubr.f32.mxu0 0.0
    %379 = vmatmul.mubr.f32.gmra.mxu0 %v144
    %v380 = vpop.f32.mrf.mxu0
    %v381 = vadd.f32 %v107, %v380
    %v382 = vpop.f32.mrf.mxu0
    %v383 = vadd.f32 %v107, %v382
    %384 = vmatprep.mubr.f32.mxu0 0.0
    %385 = vmatmul.mubr.f32.gmra.mxu0 %v147
    %v386 = vpop.f32.mrf.mxu0
    %v387 = vadd.f32 %v112, %v386
    %v388 = vpop.f32.mrf.mxu0
    %v389 = vadd.f32 %v112, %v388
    %390 = vmatprep.mubr.f32.mxu0 0.0
    %391 = vmatmul.mubr.f32.gmra.mxu0 %v150
    %v392 = vpop.f32.mrf.mxu0
    %v393 = vadd.f32 %v117, %v392
    %v394 = vpop.f32.mrf.mxu0
    %v395 = vadd.f32 %v117, %v394
    %396 = vmatprep.mubr.f32.mxu0 0.0
    %397 = vmatmul.mubr.f32.gmra.mxu0 %v153
    %v398 = vpop.f32.mrf.mxu0
    %v399 = vadd.f32 %v122, %v398
    %v400 = vpop.f32.mrf.mxu0
    %v401 = vadd.f32 %v122, %v400
    %402 = vmatprep.mubr.f32.mxu0 0.0
    %403 = vmatmul.mubr.f32.gmra.mxu0 %v156
    %v404 = vpop.f32.mrf.mxu0
    %v405 = vadd.f32 %v127, %v404
    %v406 = vpop.f32.mrf.mxu0
    %v407 = vadd.f32 %v127, %v406
    %408 = vmatprep.mubr.f32.mxu0 0.0
    %409 = vmatmul.mubr.f32.gmra.mxu0 %v159
    %v410 = vpop.f32.mrf.mxu0
    %v411 = vadd.f32 %v132, %v410
    %v412 = vpop.f32.mrf.mxu0
    %v413 = vadd.f32 %v132, %v412
    %414 = vmatprep.mubr.f32.mxu0 0.0
    %415 = vmatmul.mubr.f32.gmra.mxu0 %v162
    %v416 = vpop.f32.mrf.mxu0
    %v417 = vadd.f32 %v137, %v416
    %v418 = vpop.f32.mrf.mxu0
    %v419 = vadd.f32 %v137, %v418
    %420 = vdwg.mxu0
    %421 = vmatprep.subr.mxu0 0.0
    %422 = vmatpush1.xpose.msra.mxu0 %v306
    %423 = vmatprep.subr.mxu0 0.0
    %424 = vmatpush1.xpose.msra.mxu0 %v303
    %425 = vmatprep.subr.mxu0 0.0
    %426 = vmatpush1.xpose.msra.mxu0 %v300
    %427 = vmatprep.subr.mxu0 0.0
    %428 = vmatpush1.xpose.msra.mxu0 %v297
    %429 = vmatprep.subr.mxu0 0.0
    %430 = vmatpush1.xpose.msra.mxu0 %v294
    %431 = vmatprep.subr.mxu0 0.0
    %432 = vmatpush1.xpose.msra.mxu0 %v291
    %433 = vmatprep.subr.mxu0 0.0
    %434 = vmatpush1.xpose.msra.mxu0 %v288
    %435 = vmatprep.subr.mxu0 0.0
    %436 = vmatpush1.xpose.msra.mxu0 %v285
    %437 = vmatprep.subr.mxu0 0.0
    %438 = vmatpush1.xpose.msra.mxu0 %v282
    %439 = vmatprep.subr.mxu0 0.0
    %440 = vmatpush1.xpose.msra.mxu0 %v279
    %441 = vmatprep.subr.mxu0 0.0
    %442 = vmatpush1.xpose.msra.mxu0 %v276
    %443 = vmatprep.subr.mxu0 0.0
    %444 = vmatpush1.xpose.msra.mxu0 %v273
    %445 = vmatprep.subr.mxu0 0.0
    %446 = vmatpush1.xpose.msra.mxu0 %v270
    %447 = vmatprep.subr.mxu0 0.0
    %448 = vmatpush1.xpose.msra.mxu0 %v267
    %449 = vmatprep.subr.mxu0 0.0
    %450 = vmatpush1.xpose.msra.mxu0 %v264
    %451 = vmatprep.subr.mxu0 0.0
    %452 = vmatpush1.xpose.msra.mxu0 %v261
    %453 = vmatprep.subr.mxu0 0.0
    %454 = vmatpush2.xpose.msra.mxu0 0.0
    %455 = vmatprep.subr.mxu0 0.0
    %456 = vmatpush2.xpose.msra.mxu0 0.0
    %457 = vmatprep.subr.mxu0 0.0
    %458 = vmatpush2.xpose.msra.mxu0 0.0
    %459 = vmatprep.subr.mxu0 0.0
    %460 = vmatpush2.xpose.msra.mxu0 0.0
    %461 = vmatprep.subr.mxu0 0.0
    %462 = vmatpush2.xpose.msra.mxu0 0.0
    %463 = vmatprep.subr.mxu0 0.0
    %464 = vmatpush2.xpose.msra.mxu0 0.0
    %465 = vmatprep.subr.mxu0 0.0
    %466 = vmatpush2.xpose.msra.mxu0 0.0
    %467 = vmatprep.subr.mxu0 0.0
    %468 = vmatpush2.xpose.msra.mxu0 0.0
    %469 = vmatprep.subr.mxu0 0.0
    %470 = vmatpush2.xpose.msra.mxu0 0.0
    %471 = vmatprep.subr.mxu0 0.0
    %472 = vmatpush2.xpose.msra.mxu0 0.0
    %473 = vmatprep.subr.mxu0 0.0
    %474 = vmatpush2.xpose.msra.mxu0 0.0
    %475 = vmatprep.subr.mxu0 0.0
    %476 = vmatpush2.xpose.msra.mxu0 0.0
    %477 = vmatprep.subr.mxu0 0.0
    %478 = vmatpush2.xpose.msra.mxu0 0.0
    %479 = vmatprep.subr.mxu0 0.0
    %480 = vmatpush2.xpose.msra.mxu0 0.0
    %481 = vmatprep.subr.mxu0 0.0
    %482 = vmatpush2.xpose.msra.mxu0 0.0
    %483 = vmatprep.subr.mxu0 0.0
    %484 = vmatpush2.xpose.msra.mxu0 0.0
    %485 = vmatprep.mubr.f32.mxu0 0.0
    %486 = vmatmul.mubr.f32.gmra.mxu0 %v141
    %v487 = vpop.f32.mrf.mxu0
    %v488 = vadd.f32 %v102, %v487
    %v489 = vpop.f32.mrf.mxu0
    %490 = vmatprep.mubr.f32.mxu0 0.0
    %491 = vmatmul.mubr.f32.gmra.mxu0 %v144
    %v492 = vpop.f32.mrf.mxu0
    %v493 = vadd.f32 %v107, %v492
    %v494 = vpop.f32.mrf.mxu0
    %495 = vmatprep.mubr.f32.mxu0 0.0
    %496 = vmatmul.mubr.f32.gmra.mxu0 %v147
    %v497 = vpop.f32.mrf.mxu0
    %v498 = vadd.f32 %v112, %v497
    %v499 = vpop.f32.mrf.mxu0
    %500 = vmatprep.mubr.f32.mxu0 0.0
    %501 = vmatmul.mubr.f32.gmra.mxu0 %v150
    %v502 = vpop.f32.mrf.mxu0
    %v503 = vadd.f32 %v117, %v502
    %v504 = vpop.f32.mrf.mxu0
    %505 = vmatprep.mubr.f32.mxu0 0.0
    %506 = vmatmul.mubr.f32.gmra.mxu0 %v153
    %v507 = vpop.f32.mrf.mxu0
    %v508 = vadd.f32 %v122, %v507
    %v509 = vpop.f32.mrf.mxu0
    %510 = vmatprep.mubr.f32.mxu0 0.0
    %511 = vmatmul.mubr.f32.gmra.mxu0 %v156
    %v512 = vpop.f32.mrf.mxu0
    %v513 = vadd.f32 %v127, %v512
    %v514 = vpop.f32.mrf.mxu0
    %515 = vmatprep.mubr.f32.mxu0 0.0
    %516 = vmatmul.mubr.f32.gmra.mxu0 %v159
    %v517 = vpop.f32.mrf.mxu0
    %v518 = vadd.f32 %v132, %v517
    %v519 = vpop.f32.mrf.mxu0
    %520 = vmatprep.mubr.f32.mxu0 0.0
    %521 = vmatmul.mubr.f32.gmra.mxu0 %v162
    %v522 = vpop.f32.mrf.mxu0
    %v523 = vadd.f32 %v137, %v522
    %v524 = vpop.f32.mrf.mxu0
    %525 = vdwg.mxu0
    %v526 = vmax.f32 %v375, 0.0
    %v527 = vmax.f32 %v377, 0.0
    %v528 = vmax.f32 %v488, 0.0
    %v529 = vmax.f32 %v381, 0.0
    %v530 = vmax.f32 %v383, 0.0
    %v531 = vmax.f32 %v493, 0.0
    %v532 = vmax.f32 %v387, 0.0
    %v533 = vmax.f32 %v389, 0.0
    %v534 = vmax.f32 %v498, 0.0
    %v535 = vmax.f32 %v393, 0.0
    %v536 = vmax.f32 %v395, 0.0
    %v537 = vmax.f32 %v503, 0.0
    %v538 = vmax.f32 %v399, 0.0
    %v539 = vmax.f32 %v401, 0.0
    %v540 = vmax.f32 %v508, 0.0
    %v541 = vmax.f32 %v405, 0.0
    %v542 = vmax.f32 %v407, 0.0
    %v543 = vmax.f32 %v513, 0.0
    %v544 = vmax.f32 %v411, 0.0
    %v545 = vmax.f32 %v413, 0.0
    %v546 = vmax.f32 %v518, 0.0
    %v547 = vmax.f32 %v417, 0.0
    %v548 = vmax.f32 %v419, 0.0
    %v549 = vmax.f32 %v523, 0.0
    %v550 = vld [vmem:[%s3] sm:$0xff]
    %v551 = vld [vmem:[%s3 + $0x8] sm:$0xff]
    %v552 = vld [vmem:[%s3 + $0x10] sm:$0xff]
    %v553 = vld [vmem:[%s3 + $0x18] sm:$0xff]
    %v554 = vld [vmem:[%s4] sm:$0xff]
    %v555 = vld [vmem:[%s4 + $0x8] sm:$0xff]
    %v556 = vld [vmem:[%s4 + $0x10] sm:$0xff]
    %v557 = vld [vmem:[%s4 + $0x18] sm:$0xff]
    %559 = vset.pattern.permute.xlu0 0
    %560 = vperm.xlu0 %559, %v554
    %v561 = vpop.permute.xlu0 %560
    %564 = vset.pattern.permute.xlu0 0
    %565 = vperm.xlu0 %564, %v555
    %v566 = vpop.permute.xlu0 %565
    %569 = vset.pattern.permute.xlu0 0
    %570 = vperm.xlu0 %569, %v556
    %v571 = vpop.permute.xlu0 %570
    %574 = vset.pattern.permute.xlu0 0
    %575 = vperm.xlu0 %574, %v557
    %v576 = vpop.permute.xlu0 %575
    %vm578 = vcmask 523264
    %v580 = vsel %vm578, %v550, 0
    %v583 = vsel %vm578, %v551, 0
    %v586 = vsel %vm578, %v552, 0
    %v589 = vsel %vm578, %v553, 0
    %591 = vmatprep.subr.mxu0 0.0
    %592 = vmatpush1.msra.mxu0 0.0
    %593 = vmatprep.subr.mxu0 0.0
    %594 = vmatpush1.msra.mxu0 0.0
    %595 = vmatprep.subr.mxu0 0.0
    %596 = vmatpush1.msra.mxu0 0.0
    %597 = vmatprep.subr.mxu0 0.0
    %598 = vmatpush1.msra.mxu0 0.0
    %599 = vmatprep.subr.mxu0 0.0
    %600 = vmatpush1.msra.mxu0 0.0
    %601 = vmatprep.subr.mxu0 0.0
    %602 = vmatpush1.msra.mxu0 0.0
    %603 = vmatprep.subr.mxu0 0.0
    %604 = vmatpush1.msra.mxu0 0.0
    %605 = vmatprep.subr.mxu0 0.0
    %606 = vmatpush1.msra.mxu0 0.0
    %607 = vmatprep.subr.mxu0 %v548
    %608 = vmatpush1.msra.mxu0 %v547
    %609 = vmatprep.subr.mxu0 %v545
    %610 = vmatpush1.msra.mxu0 %v544
    %611 = vmatprep.subr.mxu0 %v542
    %612 = vmatpush1.msra.mxu0 %v541
    %613 = vmatprep.subr.mxu0 %v539
    %614 = vmatpush1.msra.mxu0 %v538
    %615 = vmatprep.subr.mxu0 %v536
    %616 = vmatpush1.msra.mxu0 %v535
    %617 = vmatprep.subr.mxu0 %v533
    %618 = vmatpush1.msra.mxu0 %v532
    %619 = vmatprep.subr.mxu0 %v530
    %620 = vmatpush1.msra.mxu0 %v529
    %621 = vmatprep.subr.mxu0 %v527
    %622 = vmatpush1.msra.mxu0 %v526
    %623 = vmatprep.subr.mxu0 0.0
    %624 = vmatpush2.msra.mxu0 0.0
    %625 = vmatprep.subr.mxu0 0.0
    %626 = vmatpush2.msra.mxu0 0.0
    %627 = vmatprep.subr.mxu0 0.0
    %628 = vmatpush2.msra.mxu0 0.0
    %629 = vmatprep.subr.mxu0 0.0
    %630 = vmatpush2.msra.mxu0 0.0
    %631 = vmatprep.subr.mxu0 0.0
    %632 = vmatpush2.msra.mxu0 0.0
    %633 = vmatprep.subr.mxu0 0.0
    %634 = vmatpush2.msra.mxu0 0.0
    %635 = vmatprep.subr.mxu0 0.0
    %636 = vmatpush2.msra.mxu0 0.0
    %637 = vmatprep.subr.mxu0 0.0
    %638 = vmatpush2.msra.mxu0 0.0
    %639 = vmatprep.subr.mxu0 0.0
    %640 = vmatpush2.msra.mxu0 0.0
    %641 = vmatprep.subr.mxu0 0.0
    %642 = vmatpush2.msra.mxu0 0.0
    %643 = vmatprep.subr.mxu0 0.0
    %644 = vmatpush2.msra.mxu0 0.0
    %645 = vmatprep.subr.mxu0 0.0
    %646 = vmatpush2.msra.mxu0 0.0
    %647 = vmatprep.subr.mxu0 0.0
    %648 = vmatpush2.msra.mxu0 0.0
    %649 = vmatprep.subr.mxu0 0.0
    %650 = vmatpush2.msra.mxu0 0.0
    %651 = vmatprep.subr.mxu0 0.0
    %652 = vmatpush2.msra.mxu0 0.0
    %653 = vmatprep.subr.mxu0 0.0
    %654 = vmatpush2.msra.mxu0 0.0
    %655 = vmatprep.mubr.f32.mxu0 0.0
    %656 = vmatmul.mubr.f32.gmra.mxu0 %v580
    %v657 = vpop.f32.mrf.mxu0
    %v658 = vadd.f32 %v561, %v657
    %v659 = vpop.f32.mrf.mxu0
    %v660 = vadd.f32 %v561, %v659
    %661 = vmatprep.mubr.f32.mxu0 0.0
    %662 = vmatmul.mubr.f32.gmra.mxu0 %v583
    %v663 = vpop.f32.mrf.mxu0
    %v664 = vadd.f32 %v566, %v663
    %v665 = vpop.f32.mrf.mxu0
    %v666 = vadd.f32 %v566, %v665
    %667 = vmatprep.mubr.f32.mxu0 0.0
    %668 = vmatmul.mubr.f32.gmra.mxu0 %v586
    %v669 = vpop.f32.mrf.mxu0
    %v670 = vadd.f32 %v571, %v669
    %v671 = vpop.f32.mrf.mxu0
    %v672 = vadd.f32 %v571, %v671
    %673 = vmatprep.mubr.f32.mxu0 0.0
    %674 = vmatmul.mubr.f32.gmra.mxu0 %v589
    %v675 = vpop.f32.mrf.mxu0
    %v676 = vadd.f32 %v576, %v675
    %v677 = vpop.f32.mrf.mxu0
    %v678 = vadd.f32 %v576, %v677
    %679 = vdwg.mxu0
    %680 = vmatprep.subr.mxu0 0.0
    %681 = vmatpush1.msra.mxu0 0.0
    %682 = vmatprep.subr.mxu0 0.0
    %683 = vmatpush1.msra.mxu0 0.0
    %684 = vmatprep.subr.mxu0 0.0
    %685 = vmatpush1.msra.mxu0 0.0
    %686 = vmatprep.subr.mxu0 0.0
    %687 = vmatpush1.msra.mxu0 0.0
    %688 = vmatprep.subr.mxu0 0.0
    %689 = vmatpush1.msra.mxu0 0.0
    %690 = vmatprep.subr.mxu0 0.0
    %691 = vmatpush1.msra.mxu0 0.0
    %692 = vmatprep.subr.mxu0 0.0
    %693 = vmatpush1.msra.mxu0 0.0
    %694 = vmatprep.subr.mxu0 0.0
    %695 = vmatpush1.msra.mxu0 0.0
    %696 = vmatprep.subr.mxu0 0.0
    %697 = vmatpush1.msra.mxu0 %v549
    %698 = vmatprep.subr.mxu0 0.0
    %699 = vmatpush1.msra.mxu0 %v546
    %700 = vmatprep.subr.mxu0 0.0
    %701 = vmatpush1.msra.mxu0 %v543
    %702 = vmatprep.subr.mxu0 0.0
    %703 = vmatpush1.msra.mxu0 %v540
    %704 = vmatprep.subr.mxu0 0.0
    %705 = vmatpush1.msra.mxu0 %v537
    %706 = vmatprep.subr.mxu0 0.0
    %707 = vmatpush1.msra.mxu0 %v534
    %708 = vmatprep.subr.mxu0 0.0
    %709 = vmatpush1.msra.mxu0 %v531
    %710 = vmatprep.subr.mxu0 0.0
    %711 = vmatpush1.msra.mxu0 %v528
    %712 = vmatprep.subr.mxu0 0.0
    %713 = vmatpush2.msra.mxu0 0.0
    %714 = vmatprep.subr.mxu0 0.0
    %715 = vmatpush2.msra.mxu0 0.0
    %716 = vmatprep.subr.mxu0 0.0
    %717 = vmatpush2.msra.mxu0 0.0
    %718 = vmatprep.subr.mxu0 0.0
    %719 = vmatpush2.msra.mxu0 0.0
    %720 = vmatprep.subr.mxu0 0.0
    %721 = vmatpush2.msra.mxu0 0.0
    %722 = vmatprep.subr.mxu0 0.0
    %723 = vmatpush2.msra.mxu0 0.0
    %724 = vmatprep.subr.mxu0 0.0
    %725 = vmatpush2.msra.mxu0 0.0
    %726 = vmatprep.subr.mxu0 0.0
    %727 = vmatpush2.msra.mxu0 0.0
    %728 = vmatprep.subr.mxu0 0.0
    %729 = vmatpush2.msra.mxu0 0.0
    %730 = vmatprep.subr.mxu0 0.0
    %731 = vmatpush2.msra.mxu0 0.0
    %732 = vmatprep.subr.mxu0 0.0
    %733 = vmatpush2.msra.mxu0 0.0
    %734 = vmatprep.subr.mxu0 0.0
    %735 = vmatpush2.msra.mxu0 0.0
    %736 = vmatprep.subr.mxu0 0.0
    %737 = vmatpush2.msra.mxu0 0.0
    %738 = vmatprep.subr.mxu0 0.0
    %739 = vmatpush2.msra.mxu0 0.0
    %740 = vmatprep.subr.mxu0 0.0
    %741 = vmatpush2.msra.mxu0 0.0
    %742 = vmatprep.subr.mxu0 0.0
    %743 = vmatpush2.msra.mxu0 0.0
    %744 = vmatprep.mubr.f32.mxu0 0.0
    %745 = vmatmul.mubr.f32.gmra.mxu0 %v580
    %v746 = vpop.f32.mrf.mxu0
    %v747 = vadd.f32 %v561, %v746
    %v748 = vpop.f32.mrf.mxu0
    %749 = vmatprep.mubr.f32.mxu0 0.0
    %750 = vmatmul.mubr.f32.gmra.mxu0 %v583
    %v751 = vpop.f32.mrf.mxu0
    %v752 = vadd.f32 %v566, %v751
    %v753 = vpop.f32.mrf.mxu0
    %754 = vmatprep.mubr.f32.mxu0 0.0
    %755 = vmatmul.mubr.f32.gmra.mxu0 %v586
    %v756 = vpop.f32.mrf.mxu0
    %v757 = vadd.f32 %v571, %v756
    %v758 = vpop.f32.mrf.mxu0
    %759 = vmatprep.mubr.f32.mxu0 0.0
    %760 = vmatmul.mubr.f32.gmra.mxu0 %v589
    %v761 = vpop.f32.mrf.mxu0
    %v762 = vadd.f32 %v576, %v761
    %v763 = vpop.f32.mrf.mxu0
    %764 = vdwg.mxu0
    %v765 = vmax.f32 %v658, 0.0
    %v766 = vmax.f32 %v660, 0.0
    %v767 = vmax.f32 %v747, 0.0
    %v768 = vmax.f32 %v664, 0.0
    %v769 = vmax.f32 %v666, 0.0
    %v770 = vmax.f32 %v752, 0.0
    %v771 = vmax.f32 %v670, 0.0
    %v772 = vmax.f32 %v672, 0.0
    %v773 = vmax.f32 %v757, 0.0
    %v774 = vmax.f32 %v676, 0.0
    %v775 = vmax.f32 %v678, 0.0
    %v776 = vmax.f32 %v762, 0.0
    %v777 = vld [vmem:[%s5] sm:$0xff]
    %v778 = vld [vmem:[%s5 + $0x8] sm:$0xff]
    %v779 = vld [vmem:[%s6] sm:$0xff]
    %v780 = vld [vmem:[%s6 + $0x8] sm:$0xff]
    %782 = vset.pattern.permute.xlu0 0
    %783 = vperm.xlu0 %782, %v779
    %v784 = vpop.permute.xlu0 %783
    %787 = vset.pattern.permute.xlu0 0
    %788 = vperm.xlu0 %787, %v780
    %v789 = vpop.permute.xlu0 %788
    %vm791 = vcmask 261120
    %v793 = vsel %vm791, %v777, 0
    %v796 = vsel %vm791, %v778, 0
    %798 = vmatprep.subr.mxu0 0.0
    %799 = vmatpush1.msra.mxu0 0.0
    %800 = vmatprep.subr.mxu0 0.0
    %801 = vmatpush1.msra.mxu0 0.0
    %802 = vmatprep.subr.mxu0 0.0
    %803 = vmatpush1.msra.mxu0 0.0
    %804 = vmatprep.subr.mxu0 0.0
    %805 = vmatpush1.msra.mxu0 0.0
    %806 = vmatprep.subr.mxu0 0.0
    %807 = vmatpush1.msra.mxu0 0.0
    %808 = vmatprep.subr.mxu0 0.0
    %809 = vmatpush1.msra.mxu0 0.0
    %810 = vmatprep.subr.mxu0 0.0
    %811 = vmatpush1.msra.mxu0 0.0
    %812 = vmatprep.subr.mxu0 0.0
    %813 = vmatpush1.msra.mxu0 0.0
    %814 = vmatprep.subr.mxu0 0.0
    %815 = vmatpush1.msra.mxu0 0.0
    %816 = vmatprep.subr.mxu0 0.0
    %817 = vmatpush1.msra.mxu0 0.0
    %818 = vmatprep.subr.mxu0 0.0
    %819 = vmatpush1.msra.mxu0 0.0
    %820 = vmatprep.subr.mxu0 0.0
    %821 = vmatpush1.msra.mxu0 0.0
    %822 = vmatprep.subr.mxu0 %v775
    %823 = vmatpush1.msra.mxu0 %v774
    %824 = vmatprep.subr.mxu0 %v772
    %825 = vmatpush1.msra.mxu0 %v771
    %826 = vmatprep.subr.mxu0 %v769
    %827 = vmatpush1.msra.mxu0 %v768
    %828 = vmatprep.subr.mxu0 %v766
    %829 = vmatpush1.msra.mxu0 %v765
    %830 = vmatprep.subr.mxu0 0.0
    %831 = vmatpush2.msra.mxu0 0.0
    %832 = vmatprep.subr.mxu0 0.0
    %833 = vmatpush2.msra.mxu0 0.0
    %834 = vmatprep.subr.mxu0 0.0
    %835 = vmatpush2.msra.mxu0 0.0
    %836 = vmatprep.subr.mxu0 0.0
    %837 = vmatpush2.msra.mxu0 0.0
    %838 = vmatprep.subr.mxu0 0.0
    %839 = vmatpush2.msra.mxu0 0.0
    %840 = vmatprep.subr.mxu0 0.0
    %841 = vmatpush2.msra.mxu0 0.0
    %842 = vmatprep.subr.mxu0 0.0
    %843 = vmatpush2.msra.mxu0 0.0
    %844 = vmatprep.subr.mxu0 0.0
    %845 = vmatpush2.msra.mxu0 0.0
    %846 = vmatprep.subr.mxu0 0.0
    %847 = vmatpush2.msra.mxu0 0.0
    %848 = vmatprep.subr.mxu0 0.0
    %849 = vmatpush2.msra.mxu0 0.0
    %850 = vmatprep.subr.mxu0 0.0
    %851 = vmatpush2.msra.mxu0 0.0
    %852 = vmatprep.subr.mxu0 0.0
    %853 = vmatpush2.msra.mxu0 0.0
    %854 = vmatprep.subr.mxu0 0.0
    %855 = vmatpush2.msra.mxu0 0.0
    %856 = vmatprep.subr.mxu0 0.0
    %857 = vmatpush2.msra.mxu0 0.0
    %858 = vmatprep.subr.mxu0 0.0
    %859 = vmatpush2.msra.mxu0 0.0
    %860 = vmatprep.subr.mxu0 0.0
    %861 = vmatpush2.msra.mxu0 0.0
    %862 = vmatprep.mubr.f32.mxu0 0.0
    %863 = vmatmul.mubr.f32.gmra.mxu0 %v793
    %v864 = vpop.f32.mrf.mxu0
    %v865 = vadd.f32 %v784, %v864
    %v866 = vpop.f32.mrf.mxu0
    %v867 = vadd.f32 %v784, %v866
    %868 = vmatprep.mubr.f32.mxu0 0.0
    %869 = vmatmul.mubr.f32.gmra.mxu0 %v796
    %v870 = vpop.f32.mrf.mxu0
    %v871 = vadd.f32 %v789, %v870
    %v872 = vpop.f32.mrf.mxu0
    %v873 = vadd.f32 %v789, %v872
    %874 = vdwg.mxu0
    %875 = vmatprep.subr.mxu0 0.0
    %876 = vmatpush1.msra.mxu0 0.0
    %877 = vmatprep.subr.mxu0 0.0
    %878 = vmatpush1.msra.mxu0 0.0
    %879 = vmatprep.subr.mxu0 0.0
    %880 = vmatpush1.msra.mxu0 0.0
    %881 = vmatprep.subr.mxu0 0.0
    %882 = vmatpush1.msra.mxu0 0.0
    %883 = vmatprep.subr.mxu0 0.0
    %884 = vmatpush1.msra.mxu0 0.0
    %885 = vmatprep.subr.mxu0 0.0
    %886 = vmatpush1.msra.mxu0 0.0
    %887 = vmatprep.subr.mxu0 0.0
    %888 = vmatpush1.msra.mxu0 0.0
    %889 = vmatprep.subr.mxu0 0.0
    %890 = vmatpush1.msra.mxu0 0.0
    %891 = vmatprep.subr.mxu0 0.0
    %892 = vmatpush1.msra.mxu0 0.0
    %893 = vmatprep.subr.mxu0 0.0
    %894 = vmatpush1.msra.mxu0 0.0
    %895 = vmatprep.subr.mxu0 0.0
    %896 = vmatpush1.msra.mxu0 0.0
    %897 = vmatprep.subr.mxu0 0.0
    %898 = vmatpush1.msra.mxu0 0.0
    %899 = vmatprep.subr.mxu0 0.0
    %900 = vmatpush1.msra.mxu0 %v776
    %901 = vmatprep.subr.mxu0 0.0
    %902 = vmatpush1.msra.mxu0 %v773
    %903 = vmatprep.subr.mxu0 0.0
    %904 = vmatpush1.msra.mxu0 %v770
    %905 = vmatprep.subr.mxu0 0.0
    %906 = vmatpush1.msra.mxu0 %v767
    %907 = vmatprep.subr.mxu0 0.0
    %908 = vmatpush2.msra.mxu0 0.0
    %909 = vmatprep.subr.mxu0 0.0
    %910 = vmatpush2.msra.mxu0 0.0
    %911 = vmatprep.subr.mxu0 0.0
    %912 = vmatpush2.msra.mxu0 0.0
    %913 = vmatprep.subr.mxu0 0.0
    %914 = vmatpush2.msra.mxu0 0.0
    %915 = vmatprep.subr.mxu0 0.0
    %916 = vmatpush2.msra.mxu0 0.0
    %917 = vmatprep.subr.mxu0 0.0
    %918 = vmatpush2.msra.mxu0 0.0
    %919 = vmatprep.subr.mxu0 0.0
    %920 = vmatpush2.msra.mxu0 0.0
    %921 = vmatprep.subr.mxu0 0.0
    %922 = vmatpush2.msra.mxu0 0.0
    %923 = vmatprep.subr.mxu0 0.0
    %924 = vmatpush2.msra.mxu0 0.0
    %925 = vmatprep.subr.mxu0 0.0
    %926 = vmatpush2.msra.mxu0 0.0
    %927 = vmatprep.subr.mxu0 0.0
    %928 = vmatpush2.msra.mxu0 0.0
    %929 = vmatprep.subr.mxu0 0.0
    %930 = vmatpush2.msra.mxu0 0.0
    %931 = vmatprep.subr.mxu0 0.0
    %932 = vmatpush2.msra.mxu0 0.0
    %933 = vmatprep.subr.mxu0 0.0
    %934 = vmatpush2.msra.mxu0 0.0
    %935 = vmatprep.subr.mxu0 0.0
    %936 = vmatpush2.msra.mxu0 0.0
    %937 = vmatprep.subr.mxu0 0.0
    %938 = vmatpush2.msra.mxu0 0.0
    %939 = vmatprep.mubr.f32.mxu0 0.0
    %940 = vmatmul.mubr.f32.gmra.mxu0 %v793
    %v941 = vpop.f32.mrf.mxu0
    %v942 = vadd.f32 %v784, %v941
    %v943 = vpop.f32.mrf.mxu0
    %944 = vmatprep.mubr.f32.mxu0 0.0
    %945 = vmatmul.mubr.f32.gmra.mxu0 %v796
    %v946 = vpop.f32.mrf.mxu0
    %v947 = vadd.f32 %v789, %v946
    %v948 = vpop.f32.mrf.mxu0
    %949 = vdwg.mxu0
    %v950 = vmax.f32 %v865, 0.0
    %v951 = vmax.f32 %v867, 0.0
    %v952 = vmax.f32 %v942, 0.0
    %v953 = vmax.f32 %v871, 0.0
    %v954 = vmax.f32 %v873, 0.0
    %v955 = vmax.f32 %v947, 0.0
    %v956 = vld [vmem:[%s7] sm:$0xff]
    %v957 = vld [vmem:[%s7 + $0x8] sm:$0xff]
    %959 = vset.pattern.permute.xlu0 0
    %960 = vperm.xlu0 %959, %v956
    %v961 = vpop.permute.xlu0 %960
    %964 = vset.pattern.permute.xlu0 0
    %965 = vperm.xlu0 %964, %v957
    %v966 = vpop.permute.xlu0 %965
    %v968 = vmul.f32 %v950, %v961
    %v969 = vmul.f32 %v951, %v961
    %v970 = vmul.f32 %v952, %v961
    %v971 = vmul.f32 %v953, %v966
    %v972 = vmul.f32 %v954, %v966
    %v973 = vmul.f32 %v955, %v966
    %v974 = vadd.f32 %v968, %v971
    %v975 = vrot.slane %v974, 4
    %v976 = vadd.f32 %v974, %v975
    %v977 = vrot.slane %v976, 2
    %v978 = vadd.f32 %v976, %v977
    %v979 = vrot.slane %v978, 1
    %v980 = vadd.f32 %v978, %v979
    %v981 = vadd.f32 %v969, %v972
    %v982 = vrot.slane %v981, 4
    %v983 = vadd.f32 %v981, %v982
    %v984 = vrot.slane %v983, 2
    %v985 = vadd.f32 %v983, %v984
    %v986 = vrot.slane %v985, 1
    %v987 = vadd.f32 %v985, %v986
    %v988 = vadd.f32 %v970, %v973
    %v989 = vrot.slane %v988, 4
    %v990 = vadd.f32 %v988, %v989
    %v991 = vrot.slane %v990, 2
    %v992 = vadd.f32 %v990, %v991
    %v993 = vrot.slane %v992, 1
    %v994 = vadd.f32 %v992, %v993
    %v995 = vld [vmem:[#allocation2] sm:$0x1]
    %997 = vset.pattern.permute.xlu0 0
    %998 = vperm.xlu0 %997, %v995
    %v999 = vpop.permute.xlu0 %998
    %v1001 = vlaneseq
    %v1002 = vshrl.u32 %v1001, 7
    %v1003 = vsub.s32 0, %v1002
    %v1004 = vrot.slane %v999, %v1003
    %v1005 = vadd.f32 %v980, %v1004
    %v1006 = vadd.f32 %v987, %v1004
    %v1007 = vadd.f32 %v994, %v1004
    %v1008 = vxor.u32 %v1005, 2147483648
    %v1009 = vxor.u32 %v1006, 2147483648
    %v1010 = vxor.u32 %v1007, 2147483648
    %v1011 = vmul.f32 %v1008, 1.442695
    %v1012 = vpow.pop %v1011
    %v1013 = vmul.f32 %v1009, 1.442695
    %v1014 = vpow.pop %v1013
    %v1015 = vmul.f32 %v1010, 1.442695
    %v1016 = vpow.pop %v1015
    %v1017 = vadd.f32 %v1012, 1.0
    %v1018 = vadd.f32 %v1014, 1.0
    %v1019 = vadd.f32 %v1016, 1.0
    %v1020 = vrcp.pop %v1017
    %v1021 = vmul.f32 1.0, %v1020
    %v1022 = vrcp.pop %v1018
    %v1023 = vmul.f32 1.0, %v1022
    %v1024 = vrcp.pop %v1019
    %v1025 = vmul.f32 1.0, %v1024
    %v1029 = vcombine.low %v1021, %v1023
    %v1031 = vunpack.c.l.s4 1966171168
    %v1032 = vunpack.c.0.s8 %v1031
    %v1033 = vlaneseq
    %v1034 = vshrl.u32 %v1033, 7
    %v1035 = vsub.s32 %v1032, %v1034
    %v1036 = vrot.slane %v1029, %v1035
    %v1038 = vunpack.c.l.s4 1966171168
    %v1039 = vunpack.c.0.s8 %v1038
    %v1040 = vlaneseq
    %v1041 = vshrl.u32 %v1040, 7
    %v1042 = vsub.s32 %v1039, %v1041
    %v1043 = vrot.slane %v1025, %v1042
    %v1044 = vcombine.low %v1036, %v1043
    %v1046 = vunpack.c.l.s4 1966171168
    %v1047 = vunpack.c.0.s8 %v1046
    %v1048 = vlaneseq
    %v1049 = vshrl.u32 %v1048, 7
    %v1050 = vsub.s32 %v1047, %v1049
    %v1051 = vrot.slane %v1044, %v1050
    %v1053 = vlaneseq
    %vm1054 = vcmp.ge.s32.totalorder %v1053, 0
    %vm1055 = vcmp.lt.s32.totalorder %v1053, 384
    %vm1056 = vmand %vm1054, %vm1055
    %1057 = vst.msk [vmem:[#allocation3] sm:$0x7] %vm1056, %v1051
    // Predicated region
    $region38: #{tpu_custom_call.1} parent=1 // pred_check
      _
    $region39: #{tpu_custom_call.1} parent=1 // pred_check_branch
      %1059 = sbr.rel (0) target = $region41
    $region40: #{tpu_custom_call.1} parent=1 // pred_region
      %s1061 = ssub.s32 48, 48
      %1062 = vsyncadd [#allocation4], %s1061
      %s1064 = sshll.u32 [#allocation3], 4
      %s1065 = int_to_ptr.vmem [resolvable:$true] %s1064
      %1067 = dma.vmem_to_hbm [thread:$0]  %s1065, 48, %s9, [#allocation4]
    $region41: #{tpu_custom_call.1} parent=1 // pred_fallthru
      _
    // Predicated region
    $region42: #{tpu_custom_call.1} parent=1 // pred_check
      _
    $region43: #{tpu_custom_call.1} parent=1 // pred_check_branch
      %1069 = sbr.rel (0) target = $region45
    $region44: #{tpu_custom_call.1} parent=1 // pred_region
      %1070 = dma.done [#allocation4], 48
    $region45: #{tpu_custom_call.1} parent=1 // pred_fallthru
      _
    %1071 = vsyncpa [#allocation4], 1

</llo_original>
